<compile_context>
chip_gen: v7x
topology: tpu7x:2x2x1
jax: 0.10.0
libtpu: 0.0.40
codegen_flags: <defaults>
</compile_context>

<pallas_src>
import math
from functools import partial

import numpy as np
import jax
import jax.numpy as jnp
from jax.experimental import pallas as pl
from jax.experimental.pallas import tpu as pltpu


# ---------------------------------------------------------------------------
# generation-aware budgets
# ---------------------------------------------------------------------------
def _vmem_capacity_bytes():
    try:
        info = pltpu.get_tpu_info()
        for name in ("vmem_capacity_bytes", "vmem_size_bytes", "vmem_bytes"):
            v = getattr(info, name, None)
            if v:
                return int(v)
    except Exception:
        pass
    return 64 * 1024 * 1024            # conservative default (v7x per-TC VMEM)


_VMEM_CAP = _vmem_capacity_bytes()
# ~38 MiB on v7x (64 MiB VMEM), ~76 MiB on v5e/v6e (128 MiB VMEM)
_VMEM_LIMIT = max(32 * 1024 * 1024, min(int(0.6 * _VMEM_CAP), 96 * 1024 * 1024))


# ---------------------------------------------------------------------------
# small helpers
# ---------------------------------------------------------------------------
def _round_up(x, m):
    return ((x + m - 1) // m) * m


def _pad_rows(x, n_pad):
    n = x.shape[0]
    if n == n_pad:
        return x
    return jnp.pad(x, [(0, n_pad - n)] + [(0, 0)] * (x.ndim - 1))


def _pad_last(x, target):
    pad = target - x.shape[-1]
    if pad == 0:
        return x
    return jnp.pad(x, [(0, 0)] * (x.ndim - 1) + [(0, pad)])


def _cparams():
    return pltpu.CompilerParams(dimension_semantics=("parallel",),
                                vmem_limit_bytes=_VMEM_LIMIT)


_BUF1_OK = None


def _buffered1_supported():
    """Probe once whether constant-index blocks can be single-buffered."""
    global _BUF1_OK
    if _BUF1_OK is None:
        try:
            def _probe(x_ref, o_ref):
                o_ref[...] = x_ref[...] + 1.0

            spec = pl.BlockSpec((8, 128), lambda i: (0, 0),
                                pipeline_mode=pl.Buffered(1))
            r = pl.pallas_call(
                _probe, grid=(2,),
                in_specs=[spec],
                out_specs=pl.BlockSpec((8, 128), lambda i: (i, 0)),
                out_shape=jax.ShapeDtypeStruct((16, 128), jnp.float32),
            )(jnp.zeros((8, 128), jnp.float32))
            r = np.asarray(jax.block_until_ready(r))
            _BUF1_OK = bool(np.allclose(r, 1.0))
        except Exception:
            _BUF1_OK = False
    return _BUF1_OK


def _spec(shape, index_map, *, const=False):
    """BlockSpec; constant-index blocks are single-buffered when supported."""
    if const and _buffered1_supported():
        return pl.BlockSpec(shape, index_map, pipeline_mode=pl.Buffered(1))
    return pl.BlockSpec(shape, index_map)


# ---------------------------------------------------------------------------
# Kernel 1: masked mean-pool over clip axis + pre_map (Linear + ReLU)
#   clip_feats (P, L, F) bf16, clip_mask (P, L) bf16 -> event_feats (P, H) f32
# ---------------------------------------------------------------------------
def _pool_premap_kernel(cf_ref, cm_ref, w_ref, b_ref, out_ref):
    cf = cf_ref[...].astype(jnp.float32)                   # (TP, L, F)
    cm = cm_ref[...].astype(jnp.float32)                   # (TP, L)
    pooled = jnp.sum(cf * cm[:, :, None], axis=1)          # (TP, F)
    denom = jnp.sum(cm, axis=1, keepdims=True) + 1e-5      # (TP, 1)
    pooled = pooled * pl.reciprocal(denom, approx=True)    # EUP, frees VALU
    h = jnp.dot(pooled.astype(jnp.bfloat16), w_ref[...],   # bf16 MXU, f32 acc
                preferred_element_type=jnp.float32) + b_ref[...]
    out_ref[...] = jnp.maximum(h, 0.0)                     # ReLU (Dropout = identity)


def pool_premap(clip_feats, clip_mask, w_bf16, b):
    P, L, F = clip_feats.shape
    H = w_bf16.shape[1]
    per_row = L * F * 2 + L * 2 + H * 6                    # bf16 streams + f32 out
    TP = max(8, min(256, ((_VMEM_LIMIT // 4) // (2 * per_row)) // 8 * 8))
    TP = min(TP, _round_up(P, 8))
    P_pad = _round_up(P, TP)
    cf = _pad_rows(clip_feats, P_pad).astype(jnp.bfloat16)   # halve dominant HBM read
    cm = _pad_rows(clip_mask, P_pad).astype(jnp.bfloat16)
    out = pl.pallas_call(
        _pool_premap_kernel,
        grid=(P_pad // TP,),
        in_specs=[
            pl.BlockSpec((TP, L, F), lambda i: (i, 0, 0)),
            pl.BlockSpec((TP, L), lambda i: (i, 0)),
            _spec((F, H), lambda i: (0, 0), const=True),
            _spec((1, H), lambda i: (0, 0), const=True),
        ],
        out_specs=pl.BlockSpec((TP, H), lambda i: (i, 0)),
        out_shape=jax.ShapeDtypeStruct((P_pad, H), jnp.float32),
        compiler_params=_cparams(),
    )(cf, cm, w_bf16, b)
    return out[:P]


# ---------------------------------------------------------------------------
# Kernel 2: positional branch with fused sinusoidal embedding:
#   pos_matrix rows (N*N, 2) -> sin/cos embedding (in-kernel) -> fc2(tanh(fc1))
#   -> (N*N, G) bf16.  No (N^2, H) embedding ever touches HBM.
# ---------------------------------------------------------------------------
def _pos_mlp_kernel(pm_ref, scale_ref, w1_ref, b1_ref, w2_ref, b2_ref, out_ref):
    pm = pm_ref[...]                                       # (TM, 2) f32 [d_center, d_len]
    scale = scale_ref[...]                                 # (1, H//4) = 100 / wave^(4k/H)
    arg_c = pm[:, 0:1] * scale                             # (TM, H//4)
    arg_l = pm[:, 1:2] * scale
    emb = jnp.concatenate(
        [jnp.sin(arg_c), jnp.cos(arg_c), jnp.sin(arg_l), jnp.cos(arg_l)], axis=1)
    h = jnp.dot(emb.astype(jnp.bfloat16), w1_ref[...],
                preferred_element_type=jnp.float32) + b1_ref[...]
    h = jnp.tanh(h)
    s = jnp.dot(h.astype(jnp.bfloat16), w2_ref[...],
                preferred_element_type=jnp.float32) + b2_ref[...]
    out_ref[...] = s.astype(out_ref.dtype)                 # bf16


def pos_mlp_fused(pm_flat, scale, w1_bf16, b1, w2_bf16, b2):
    M = pm_flat.shape[0]
    H = w1_bf16.shape[0]
    G = w2_bf16.shape[1]
    Q4 = scale.shape[1]
    per_row = 8 * H + 64                                   # f32 emb/h intermediates
    TM = max(8, min(512, ((_VMEM_LIMIT // 4) // per_row) // 8 * 8))
    TM = min(TM, _round_up(M, 8))
    M_pad = _round_up(M, TM)
    pm_p = _pad_rows(pm_flat, M_pad)
    out = pl.pallas_call(
        _pos_mlp_kernel,
        grid=(M_pad // TM,),
        in_specs=[
            pl.BlockSpec((TM, 2), lambda i: (i, 0)),
            _spec((1, Q4), lambda i: (0, 0), const=True),
            _spec((H, H), lambda i: (0, 0), const=True),
            _spec((1, H), lambda i: (0, 0), const=True),
            _spec((H, G), lambda i: (0, 0), const=True),
            _spec((1, G), lambda i: (0, 0), const=True),
        ],
        out_specs=pl.BlockSpec((TM, G), lambda i: (i, 0)),
        out_shape=jax.ShapeDtypeStruct((M_pad, G), jnp.bfloat16),
        compiler_params=_cparams(),
    )(pm_p, scale, w1_bf16, b1, w2_bf16, b2)
    return out[:M]


# ---------------------------------------------------------------------------
# Kernel 3a: fused [Q|K|V] projection into lane-aligned (Hp = round_up(H,128))
#   sections: e (N, H) @ W (H, 3*Hp) -> (N, 3*Hp) bf16
# ---------------------------------------------------------------------------
def _qkv_kernel(e_ref, w_ref, b_ref, out_ref):
    h = jnp.dot(e_ref[...].astype(jnp.bfloat16), w_ref[...],
                preferred_element_type=jnp.float32) + b_ref[...]
    out_ref[...] = h.astype(out_ref.dtype)


# ---------------------------------------------------------------------------
# Kernel 3b: grouped (multi-head) relational attention
#   Q rows tiled by the grid (column block 0 of the QKV buffer); K/V resident
#   (column blocks 1/2, single-buffered).  Block-diagonal mask built in-kernel
#   from segment ids; padded key columns are excluded from the softmax.
#   Folded normalization: softmax(sim)*mask / (1e-5 + sum(softmax(sim)*mask))
#                       == p*mask / (1e-5*sum(p) + sum(p*mask)).
# ---------------------------------------------------------------------------
def _attn_kernel(q_ref, k_ref, v_ref, segq_ref, segk_ref, pos_ref, out_ref,
                 *, group, head_dim):
    scale = 1.0 / math.sqrt(float(head_dim))
    q = q_ref[...]                                         # (TQ,   Hp) bf16
    k = k_ref[...]                                         # (Npad, Hp) bf16
    v = v_ref[...]                                         # (Npad, Hp) bf16
    segq = segq_ref[...]                                   # (TQ, 1)   int32
    segk = segk_ref[...]                                   # (1, Npad) int32
    mask = (segq == segk).astype(jnp.float32)              # block-diag segments (hoisted)
    pad_bias = jnp.where(segk < 0, -1e30, 0.0).astype(jnp.float32)  # kill pad key cols

    parts = []
    for g in range(group):                                 # static python unroll
        lo = g * head_dim
        qg = q[:, lo:lo + head_dim]
        kg = k[:, lo:lo + head_dim]
        vg = v[:, lo:lo + head_dim]
        # Q @ K^T without an explicit transpose; bf16 inputs, f32 accumulation
        sim = jax.lax.dot_general(qg, kg, (((1,), (1,)), ((), ())),
                                  preferred_element_type=jnp.float32) * scale
        sim = sim + pos_ref[g].astype(jnp.float32) + pad_bias
        m = jnp.max(sim, axis=-1, keepdims=True)
        p = jnp.exp(sim - m)
        s_all = jnp.sum(p, axis=-1, keepdims=True)          # softmax denominator
        pmask = p * mask
        s_msk = jnp.sum(pmask, axis=-1, keepdims=True)
        w = pmask * pl.reciprocal(1e-5 * s_all + s_msk, approx=True)
        ctx = jnp.dot(w.astype(jnp.bfloat16), vg,
                      preferred_element_type=jnp.float32)
        parts.append(jnp.maximum(ctx, 0.0))                 # F.relu
    out_ref[...] = jnp.concatenate(parts, axis=1)           # one lane-dense (TQ, H) store


def tsrm_attention(e, seg_ids, pos_sim, w_qkv_bf16, b_qkv, group, head_dim):
    N, H = e.shape
    Hp = w_qkv_bf16.shape[1] // 3

    # --- VMEM- and megacore-aware query-tile selection ------------------------
    Np0 = _round_up(N, 8)
    resident = 2 * Np0 * Hp * 2                        # single-buffered K + V (bf16)
    per_row = Np0 * (2 * group * 2 + 24) + Hp * 4      # pos (x2 buf) + f32 temps + q/out
    budget = max(_VMEM_LIMIT // 2 - resident, 1 << 20)
    TQ = max(8, min(128, (budget // per_row) // 8 * 8))
    TQ = min(TQ, Np0)
    if N > 8 and _round_up(N, TQ) // TQ < 2:           # keep both v7x cores busy
        TQ = max(8, _round_up((N + 1) // 2, 8))
    N_pad = _round_up(N, TQ)

    e_p = _pad_rows(e, N_pad)

    seg_col = np.full((N_pad, 1), -1, np.int32)        # pad query rows never match
    seg_col[:N, 0] = seg_ids
    seg_row = np.full((1, N_pad), -2, np.int32)        # pad key cols -> masked out
    seg_row[0, :N] = seg_ids
    seg_col = jnp.asarray(seg_col)
    seg_row = jnp.asarray(seg_row)

    pos_p = jnp.pad(pos_sim.astype(jnp.bfloat16),
                    ((0, 0), (0, N_pad - N), (0, N_pad - N)))

    # --- fused QKV projection, M-tile up to 256, >= 2 steps where possible ----
    TPp = min(256, N_pad)
    while N_pad % TPp:
        TPp -= 8
    if N_pad >= 16 and N_pad // TPp < 2 and (N_pad // 2) % 8 == 0:
        TPp = N_pad // 2

    qkv = pl.pallas_call(
        _qkv_kernel,
        grid=(N_pad // TPp,),
        in_specs=[
            pl.BlockSpec((TPp, H), lambda i: (i, 0)),
            _spec((H, 3 * Hp), lambda i: (0, 0), const=True),
            _spec((1, 3 * Hp), lambda i: (0, 0), const=True),
        ],
        out_specs=pl.BlockSpec((TPp, 3 * Hp), lambda i: (i, 0)),
        out_shape=jax.ShapeDtypeStruct((N_pad, 3 * Hp), jnp.bfloat16),
        compiler_params=_cparams(),
    )(e_p, w_qkv_bf16, b_qkv)

    out = pl.pallas_call(
        partial(_attn_kernel, group=group, head_dim=head_dim),
        grid=(N_pad // TQ,),
        in_specs=[
            pl.BlockSpec((TQ, Hp), lambda i: (i, 0)),             # Q rows of this tile
            _spec((N_pad, Hp), lambda i: (0, 1), const=True),     # K resident (col blk 1)
            _spec((N_pad, Hp), lambda i: (0, 2), const=True),     # V resident (col blk 2)
            pl.BlockSpec((TQ, 1), lambda i: (i, 0)),              # query segment ids
            _spec((1, N_pad), lambda i: (0, 0), const=True),      # key segment ids
            pl.BlockSpec((group, TQ, N_pad), lambda i: (0, i, 0)),  # temporal-relation bias
        ],
        out_specs=pl.BlockSpec((TQ, H), lambda i: (i, 0)),
        out_shape=jax.ShapeDtypeStruct((N_pad, H), jnp.float32),
        compiler_params=_cparams(),
    )(qkv, qkv, qkv, seg_col, seg_row, pos_p)
    return out[:N]


# ---------------------------------------------------------------------------
# Host-side glue (faithful ports of the numpy / python-loop parts)
# ---------------------------------------------------------------------------
def extract_position_matrix(bbox, nongt_dim):
    start, end = np.split(bbox, 2, axis=1)
    center = 0.5 * (start + end)
    length = (end - start).astype('float32')
    length = np.maximum(length, 0.1)
    delta_center = np.divide(center - np.transpose(center), length)
    delta_length = np.divide(np.transpose(length), length)
    delta_length = np.log(delta_length)
    delta_center = np.expand_dims(delta_center, 2)
    delta_length = np.expand_dims(delta_length, 2)
    return np.concatenate((delta_center, delta_length), axis=2)


def get_clip_level_feats_np(feats_np, vid_idx, featstamps):
    # TODO(synk): ragged, data-dependent gather/scatter kept as host glue.
    max_att_len = max(s[1] - s[0] + 1 for s in featstamps)
    P = len(featstamps)
    F = feats_np.shape[-1]
    clip_mask = np.zeros((P, max_att_len), np.float32)
    clip_feats = np.zeros((P, max_att_len, F), np.float32)
    for i, soi in enumerate(featstamps):
        v_idx = vid_idx[i]
        sel = feats_np[v_idx][soi[0]:soi[1] + 1].reshape(-1, F)
        clip_feats[i, :len(sel), :] = sel
        clip_mask[i, :len(sel)] = 1
    return clip_feats, clip_mask


def init_params(key, feature_dim, hidden_dim, group):
    ks = jax.random.split(key, 6)
    s = 0.02
    return {
        "w_pre": s * jax.random.normal(ks[0], (feature_dim, hidden_dim), jnp.float32),
        "b_pre": jnp.zeros((1, hidden_dim), jnp.float32),
        "w_q": s * jax.random.normal(ks[1], (hidden_dim, hidden_dim), jnp.float32),
        "b_q": jnp.zeros((1, hidden_dim), jnp.float32),
        "w_k": s * jax.random.normal(ks[2], (hidden_dim, hidden_dim), jnp.float32),
        "b_k": jnp.zeros((1, hidden_dim), jnp.float32),
        "w_v": s * jax.random.normal(ks[3], (hidden_dim, hidden_dim), jnp.float32),
        "b_v": jnp.zeros((1, hidden_dim), jnp.float32),
        "w_p1": s * jax.random.normal(ks[4], (hidden_dim, hidden_dim), jnp.float32),
        "b_p1": jnp.zeros((1, hidden_dim), jnp.float32),
        "w_p2": s * jax.random.normal(ks[5], (hidden_dim, group), jnp.float32),
        "b_p2": jnp.zeros((1, group), jnp.float32),
    }


def tsrm_encoder_forward(params, feats, vid_idx, featstamps, event_seq_idx,
                         timestamps, vid_time_len, hidden_dim, group,
                         use_posit_branch=True):
    feats_np = np.asarray(feats, dtype=np.float32)
    head_dim = hidden_dim // group
    Hp = _round_up(hidden_dim, 128)        # lane-aligned per-section width for fused QKV

    # bf16 copies of matmul weights (MXU inputs); biases stay f32
    w_pre = params["w_pre"].astype(jnp.bfloat16)
    w_qkv = jnp.concatenate([_pad_last(params["w_q"], Hp),
                             _pad_last(params["w_k"], Hp),
                             _pad_last(params["w_v"], Hp)], axis=1).astype(jnp.bfloat16)
    b_qkv = jnp.concatenate([_pad_last(params["b_q"], Hp),
                             _pad_last(params["b_k"], Hp),
                             _pad_last(params["b_v"], Hp)], axis=1)
    w_p1 = params["w_p1"].astype(jnp.bfloat16)
    w_p2 = params["w_p2"].astype(jnp.bfloat16)

    # --- clip-level feats + masked mean + pre_map (kernel 1) -------------------
    clip_feats_np, clip_mask_np = get_clip_level_feats_np(feats_np, vid_idx, featstamps)
    clip_feats = jnp.asarray(clip_feats_np)
    clip_mask = jnp.asarray(clip_mask_np)
    event_feats = pool_premap(clip_feats, clip_mask, w_pre, params["b_pre"])

    # --- expansion bookkeeping (host glue, O(N)) --------------------------------
    batch_size = len(event_seq_idx)
    event_num = sum(_.shape[0] * _.shape[1] for _ in event_seq_idx)
    ex_idx = np.zeros((event_num,), np.int32)
    seg_ids = np.zeros((event_num,), np.int32)        # block-diag mask segments
    timestamp_expand = []
    vid_time_len_expand = []
    total_idx = 0
    seg = 0
    vid_idx_np = np.asarray(vid_idx)
    for i in range(batch_size):
        vid_start_idx = int((vid_idx_np < i).sum())
        for j in range(event_seq_idx[i].shape[0]):
            event_idx = vid_start_idx + event_seq_idx[i][j]
            L = len(event_idx)
            ex_idx[total_idx:total_idx + L] = event_idx
            seg_ids[total_idx:total_idx + L] = seg
            timestamp_expand.extend([timestamps[ii] for ii in event_idx])
            vid_time_len_expand.extend([float(vid_time_len[i]) for _ in event_idx])
            total_idx += L
            seg += 1

    event_feats_expand = event_feats[jnp.asarray(ex_idx)]            # (N, H) gather

    # --- temporal relation (positional) branch (kernel 2, embedding fused) -----
    if use_posit_branch:
        pos_matrix = extract_position_matrix(np.array(timestamp_expand), event_num)
        pm_flat = jnp.asarray(pos_matrix.reshape(-1, 2), jnp.float32)        # (N^2, 2)
        q4 = hidden_dim // 4
        dim_mat = np.power(10000.0,
                           (4.0 / hidden_dim) * np.arange(q4, dtype=np.float32))
        scale = jnp.asarray((100.0 / dim_mat).reshape(1, q4), jnp.float32)
        pos_flat = pos_mlp_fused(pm_flat, scale, w_p1, params["b_p1"],
                                 w_p2, params["b_p2"])                       # (N^2, G) bf16
        pos_sim = jnp.transpose(pos_flat.reshape(event_num, event_num, group),
                                (2, 0, 1))                                   # (G, N, N) bf16
        # TODO(synk): fully fusing the positional branch into the attention kernel
        # would also remove this small bf16 (G,N,N) transpose / HBM round trip.
    else:
        pos_sim = jnp.zeros((group, event_num, event_num), jnp.bfloat16)

    # --- grouped relational attention (kernels 3a/3b) ---------------------------
    attn_out = tsrm_attention(event_feats_expand, seg_ids, pos_sim,
                              w_qkv, b_qkv, group, head_dim)                 # (N, H) relu'd

    event_ctx = jnp.concatenate([attn_out, event_feats_expand], axis=1)      # (N, 2H)
    # Dropout(0.5) -> identity in eval mode

    # --- timestamp indicator features (host glue) -------------------------------
    pos_ind = np.zeros((event_num, 100), np.float32)
    for i in range(event_num):
        s, e = timestamp_expand[i]
        duration = vid_time_len_expand[i]
        s, e = (min(int(s / duration * 99), 99), min(int(e / duration * 99), 99))
        pos_ind[i, s:e + 1] = 1
    event_ctx = jnp.concatenate([event_ctx, jnp.asarray(pos_ind)], axis=1)   # (N, 2H+100)

    return event_ctx, clip_feats, clip_mask


if __name__ == "__main__":
    key = jax.random.PRNGKey(0)
    B, T, F = 2, 16, 64          # batch, time steps, feature_dim
    H, G = 32, 4                 # hidden_dim, group_num

    k_feat, k_par = jax.random.split(key)
    feats = jax.random.normal(k_feat, (B, T, F), jnp.float32)

    # 3 proposals per video
    featstamps = [(0, 3), (4, 7), (8, 11), (0, 5), (6, 10), (11, 15)]
    vid_idx = np.array([0, 0, 0, 1, 1, 1], np.int32)
    event_seq_idx = [np.array([[0, 1, 2]], np.int32), np.array([[0, 1, 2]], np.int32)]
    timestamps = [[0.0, 7.67], [7.67, 31.94], [31.94, 50.25],
                  [0.0, 20.0], [20.0, 45.0], [45.0, 60.0]]
    vid_time_len = np.array([50.25, 60.0], np.float32)

    params = init_params(k_par, F, H, G)

    event_ctx, clip_feats, clip_mask = tsrm_encoder_forward(
        params, feats, vid_idx, featstamps, event_seq_idx, timestamps,
        vid_time_len, hidden_dim=H, group=G, use_posit_branch=True)

    jax.block_until_ready(event_ctx)
    assert event_ctx.shape == (6, 2 * H + 100)
    assert bool(jnp.all(jnp.isfinite(event_ctx)))
    print("KERNEL_OK")
</pallas_src>

<mosaic_0001>
module attributes {stable_mosaic.version = 11 : i64} {
  func.func @_probe(%arg0: i32, %arg1: memref<8x128xf32, #tpu.memory_space<vmem>>, %arg2: memref<8x128xf32, #tpu.memory_space<vmem>>) attributes {dimension_semantics = [#tpu.dimension_semantics<arbitrary>], iteration_bounds = array<i64: 2>, scalar_prefetch = 0 : i64, scratch_operands = 0 : i64, tpu.core_type = #tpu.core_type<tc>, window_params = [{pipeline_mode = #tpu.pipeline_mode<synchronous>, transform_indices = @transform_0, window_bounds = array<i64: 8, 128>}, {transform_indices = @transform_1, window_bounds = array<i64: 8, 128>}]} {
    %c0 = arith.constant 0 : index
    %c0_0 = arith.constant 0 : index
    %0 = vector.load %arg1[%c0, %c0_0] : memref<8x128xf32, #tpu.memory_space<vmem>>, vector<8x128xf32>
    %cst = arith.constant 1.000000e+00 : f32
    %1 = vector.broadcast %cst : f32 to vector<8x128xf32>
    %2 = arith.addf %0, %1 : vector<8x128xf32>
    %c0_1 = arith.constant 0 : index
    %c0_2 = arith.constant 0 : index
    %3 = vector.load %arg2[%c0_1, %c0_2] : memref<8x128xf32, #tpu.memory_space<vmem>>, vector<8x128xf32>
    tpu.vector_store %arg2[%c0_1, %c0_2], %2 {strides = array<i32>} : memref<8x128xf32, #tpu.memory_space<vmem>>, vector<8x128xf32>,
    return
  }
  func.func @transform_0(%arg0: i32) -> (i32, i32) {
    %c0_i32 = arith.constant 0 : i32
    %c0_i32_0 = arith.constant 0 : i32
    %c0_i32_1 = arith.constant 0 : i32
    return %c0_i32, %c0_i32_0 : i32, i32
  }
  func.func @transform_1(%arg0: i32) -> (i32, i32) {
    %c0_i32 = arith.constant 0 : i32
    %c0_i32_0 = arith.constant 0 : i32
    return %arg0, %c0_i32 : i32, i32
  }
}

module attributes {stable_mosaic.version = 11 : i64} {
  func.func @_pool_premap_kernel(%arg0: i32, %arg1: memref<8x6x64xbf16, #tpu.memory_space<vmem>>, %arg2: memref<8x6xbf16, #tpu.memory_space<vmem>>, %arg3: memref<64x32xbf16, #tpu.memory_space<vmem>>, %arg4: memref<1x32xf32, #tpu.memory_space<vmem>>, %arg5: memref<8x32xf32, #tpu.memory_space<vmem>>) attributes {dimension_semantics = [#tpu.dimension_semantics<parallel>], iteration_bounds = array<i64: 1>, scalar_prefetch = 0 : i64, scratch_operands = 0 : i64, tpu.core_type = #tpu.core_type<tc>, window_params = [{transform_indices = @transform_0, window_bounds = array<i64: 8, 6, 64>}, {transform_indices = @transform_1, window_bounds = array<i64: 8, 6>}, {pipeline_mode = #tpu.pipeline_mode<synchronous>, transform_indices = @transform_2, window_bounds = array<i64: 64, 32>}, {pipeline_mode = #tpu.pipeline_mode<synchronous>, transform_indices = @transform_3, window_bounds = array<i64: 1, 32>}, {transform_indices = @transform_4, window_bounds = array<i64: 8, 32>}]} {
    %c0 = arith.constant 0 : index
    %c0_0 = arith.constant 0 : index
    %c0_1 = arith.constant 0 : index
    %0 = vector.load %arg1[%c0, %c0_0, %c0_1] : memref<8x6x64xbf16, #tpu.memory_space<vmem>>, vector<8x6x64xbf16>
    %1 = arith.extf %0 : vector<8x6x64xbf16> to vector<8x6x64xf32>
    %c0_2 = arith.constant 0 : index
    %c0_3 = arith.constant 0 : index
    %2 = vector.load %arg2[%c0_2, %c0_3] : memref<8x6xbf16, #tpu.memory_space<vmem>>, vector<8x6xbf16>
    %3 = arith.extf %2 : vector<8x6xbf16> to vector<8x6xf32>
    %4 = vector.shape_cast %3 : vector<8x6xf32> to vector<8x6x1xf32>
    %5 = vector.broadcast %4 : vector<8x6x1xf32> to vector<8x6x64xf32>
    %6 = arith.mulf %1, %5 : vector<8x6x64xf32>
    %cst = arith.constant dense<0.000000e+00> : vector<8x64xf32>
    %7 = vector.multi_reduction <add>, %6, %cst [1] : vector<8x6x64xf32> to vector<8x64xf32>
    %cst_4 = arith.constant dense<0.000000e+00> : vector<8xf32>
    %8 = vector.multi_reduction <add>, %3, %cst_4 [1] : vector<8x6xf32> to vector<8xf32>
    %9 = vector.shape_cast %8 : vector<8xf32> to vector<8x1xf32>
    %cst_5 = arith.constant 9.99999974E-6 : f32
    %10 = vector.broadcast %cst_5 : f32 to vector<8x1xf32>
    %11 = arith.addf %9, %10 : vector<8x1xf32>
    %12 = tpu.reciprocal %11 {approx = true} : vector<8x1xf32> -> vector<8x1xf32>
    %13 = vector.broadcast %12 : vector<8x1xf32> to vector<8x64xf32>
    %14 = arith.mulf %7, %13 : vector<8x64xf32>
    %15 = arith.truncf %14 : vector<8x64xf32> to vector<8x64xbf16>
    %c0_6 = arith.constant 0 : index
    %c0_7 = arith.constant 0 : index
    %16 = vector.load %arg3[%c0_6, %c0_7] : memref<64x32xbf16, #tpu.memory_space<vmem>>, vector<64x32xbf16>
    %cst_8 = arith.constant dense<0.000000e+00> : vector<8x32xf32>
    %17 = tpu.matmul %15, %16, %cst_8 {dimension_numbers = #tpu.dot_dimension_numbers<[1], [0], [0], [1], [0, 0, 1, 1], [], []>} : vector<8x64xbf16>, vector<64x32xbf16>, vector<8x32xf32> -> vector<8x32xf32>
    %c0_9 = arith.constant 0 : index
    %c0_10 = arith.constant 0 : index
    %18 = vector.load %arg4[%c0_9, %c0_10] : memref<1x32xf32, #tpu.memory_space<vmem>>, vector<1x32xf32>
    %19 = vector.broadcast %18 : vector<1x32xf32> to vector<8x32xf32>
    %20 = arith.addf %17, %19 : vector<8x32xf32>
    %cst_11 = arith.constant 0.000000e+00 : f32
    %21 = vector.broadcast %cst_11 : f32 to vector<8x32xf32>
    %22 = arith.maximumf %20, %21 : vector<8x32xf32>
    %c0_12 = arith.constant 0 : index
    %c0_13 = arith.constant 0 : index
    %23 = vector.load %arg5[%c0_12, %c0_13] : memref<8x32xf32, #tpu.memory_space<vmem>>, vector<8x32xf32>
    tpu.vector_store %arg5[%c0_12, %c0_13], %22 {strides = array<i32>} : memref<8x32xf32, #tpu.memory_space<vmem>>, vector<8x32xf32>,
    return
  }
  func.func @transform_0(%arg0: i32) -> (i32, i32, i32) {
    %c0_i32 = arith.constant 0 : i32
    %c0_i32_0 = arith.constant 0 : i32
    %c0_i32_1 = arith.constant 0 : i32
    return %arg0, %c0_i32, %c0_i32_0 : i32, i32, i32
  }
  func.func @transform_1(%arg0: i32) -> (i32, i32) {
    %c0_i32 = arith.constant 0 : i32
    %c0_i32_0 = arith.constant 0 : i32
    return %arg0, %c0_i32 : i32, i32
  }
  func.func @transform_2(%arg0: i32) -> (i32, i32) {
    %c0_i32 = arith.constant 0 : i32
    %c0_i32_0 = arith.constant 0 : i32
    %c0_i32_1 = arith.constant 0 : i32
    return %c0_i32, %c0_i32_0 : i32, i32
  }
  func.func @transform_3(%arg0: i32) -> (i32, i32) {
    %c0_i32 = arith.constant 0 : i32
    %c0_i32_0 = arith.constant 0 : i32
    %c0_i32_1 = arith.constant 0 : i32
    return %c0_i32, %c0_i32_0 : i32, i32
  }
  func.func @transform_4(%arg0: i32) -> (i32, i32) {
    %c0_i32 = arith.constant 0 : i32
    %c0_i32_0 = arith.constant 0 : i32
    return %arg0, %c0_i32 : i32, i32
  }
}

</mosaic_0001>

<llo_original>
// kernel: tpu_custom_call.1
$region0: #{tpu_custom_call.1}
  #allocation0 [shape = 'u32[]', space=smem, size = 0x4, offset = 0x4, fixed_abs, tag = 'smem constant byte address 0x4 - core index']
  #allocation1 [shape = 'u32[144,128]{1,0:T(1,128)}', space=vmem, size = 0x12000, scoped, tag = 'internal scratch']
  %s0 = inlined_call_operand.hbm [shape: f32[8,128], index: 0, kind: input, shape index: {}]
  %s1 = inlined_call_operand.hbm [shape: f32[16,128], index: 1, kind: output, shape index: {}]
  %s2 = sld [smem:[#allocation0]]
  $region41: #{tpu_custom_call.1} parent=0
    _
  %s4 = ssub.s32 1, %s2
  %s5 = scalar_select 0, %s4, %s2
  $region1: #{tpu_custom_call.1} parent=0
    #allocation2 [shape = 'u8[4096]{0}', space=vmem, size = 0x1000, scoped, tag = 'input window, operand 0, single buffered']
    #allocation3 [shape = 's32[2]{0}', space=sflag, size = 0x8, scoped, tag = 'scoped memory for tpu_custom_call.1']
    #allocation4 [shape = 's32[2]{0}', space=sflag, size = 0x8, scoped, tag = 'scoped memory for tpu_custom_call.1']
    #allocation5 [shape = 'u8[8192]{0}', space=vmem, size = 0x2000, scoped, tag = 'output window, operand 0']
    %6 = vsyncpa [#allocation3], 0
    %7 = vsyncpa [#allocation4], 0
    %s8 = scalar_lea.sflag [#allocation4], 1
    %9 = vsyncpa %s8, 0
    loop: start=0, step=1, limit=4
    $region2: #{tpu_custom_call.1} parent=1 // loop_pre_header
      _
    $region3: #{tpu_custom_call.1} parent=1 // loop_header
      %s11 = sphi 0, %s15
      %p12 = scmp.ge.s32.totalorder %s11, 4
      %s19 = sphi 0, %s19
      %s21 = sphi 0, %s19
      %s22 = sphi 0, %s21
      %s36 = sphi 0, %s22
      %s42 = sphi 0, %s44
      %s45 = sphi 0, %s42
      %s46 = sphi 0, %s45
      %s62 = sphi 0, %s46
    $region4: #{tpu_custom_call.1} parent=1 // loop_header_branch
      %14 = sbr.rel (%p12) target = $region8
    $region5: #{tpu_custom_call.1} parent=1 // loop_body
      %s16 = ssub.s32 %s11, 1
      %s17 = ssub.s32 %s11, 2
      %s18 = sadd.s32 %s11, 1
      %s20 = sadd.s32 %s19, 1
      %p23 = scmp.eq.s32.totalorder %s11, 1
      %p24 = scmp.ne.s32.totalorder %s19, %s21
      %p25 = scmp.eq.s32.totalorder %s11, 0
      %p26 = por %p24, %p25
      %p27 = scmp.ne.s32.totalorder %s19, %s21
      %p28 = scmp.eq.s32.totalorder %s16, 1
      %p29 = por %p27, %p28
      %p30 = scmp.ne.s32.totalorder %s21, %s22
      %p31 = scmp.eq.s32.totalorder %s16, 0
      %p32 = por %p30, %p31
      %p33 = scmp.ne.s32.totalorder %s21, %s22
      %p34 = scmp.eq.s32.totalorder %s17, 1
      %p35 = por %p33, %p34
      %p37 = scmp.ne.s32.totalorder %s22, %s36
      %p38 = scmp.eq.s32.totalorder %s17, 0
      %p39 = por %p37, %p38
      %s40 = ssub.s32 %s11, %s18
      %p41 = scmp.eq.s32.totalorder %s40, 0
      %s43 = sadd.s32 %s42, 1
      %s44 = scalar_select %p41, %s42, %s43
      %p47 = pneg %p41
      %p48 = scmp.eq.s32.totalorder %s11, 1
      %p49 = por %p47, %p48
      %p50 = scmp.ne.s32.totalorder %s42, %s45
      %p51 = scmp.eq.s32.totalorder %s11, 0
      %p52 = por %p50, %p51
      %p53 = scmp.ne.s32.totalorder %s42, %s45
      %p54 = scmp.eq.s32.totalorder %s16, 1
      %p55 = por %p53, %p54
      %p56 = scmp.ne.s32.totalorder %s45, %s46
      %p57 = scmp.eq.s32.totalorder %s16, 0
      %p58 = por %p56, %p57
      %p59 = scmp.ne.s32.totalorder %s45, %s46
      %p60 = scmp.eq.s32.totalorder %s17, 1
      %p61 = por %p59, %p60
      %p63 = scmp.ne.s32.totalorder %s46, %s62
      %p64 = scmp.eq.s32.totalorder %s17, 0
      %p65 = por %p63, %p64
      %p66 = scmp.le.s32.totalorder 1, %s11
      %p67 = scmp.lt.s32.totalorder %s11, 3
      %p68 = pnand %p66, %p67
      %p69 = pneg %p68
      // Predicated region
      $region9: #{tpu_custom_call.1} parent=5 // pred_check
        _
      $region10: #{tpu_custom_call.1} parent=5 // pred_check_branch
        %71 = sbr.rel (%p68) target = $region12
      $region11: #{tpu_custom_call.1} parent=5 // pred_region
        %s72 = ssub.s32 %s11, 1
        // Predicated region
        $region13: #{tpu_custom_call.1} parent=11 // pred_check
          %p73 = pneg %p32
        $region14: #{tpu_custom_call.1} parent=11 // pred_check_branch
          %75 = sbr.rel (%p73) target = $region16
        $region15: #{tpu_custom_call.1} parent=11 // pred_region
          %s77 = ssub.s32 128, 128
          %78 = vsyncadd [#allocation3], %s77
          %s80 = sshll.u32 [#allocation2], 4
          %s81 = int_to_ptr.vmem [resolvable:$true] %s80
          %83 = dma.hbm_to_vmem [thread:$0]  %s0, 128, %s81, [#allocation3]
        $region16: #{tpu_custom_call.1} parent=11 // pred_fallthru
          _
      $region12: #{tpu_custom_call.1} parent=5 // pred_fallthru
        _
      %p84 = scmp.lt.s32.totalorder %s11, 2
      // Predicated region
      $region17: #{tpu_custom_call.1} parent=5 // pred_check
        %p85 = pneg %p84
      $region18: #{tpu_custom_call.1} parent=5 // pred_check_branch
        %87 = sbr.rel (%p85) target = $region20
      $region19: #{tpu_custom_call.1} parent=5 // pred_region
        _
      $region20: #{tpu_custom_call.1} parent=5 // pred_fallthru
        _
      %p88 = scmp.le.s32.totalorder 1, %s11
      %p89 = scmp.lt.s32.totalorder %s11, 3
      %p90 = pnand %p88, %p89
      %p91 = pneg %p90
      // Predicated region
      $region21: #{tpu_custom_call.1} parent=5 // pred_check
        _
      $region22: #{tpu_custom_call.1} parent=5 // pred_check_branch
        %93 = sbr.rel (%p90) target = $region24
      $region23: #{tpu_custom_call.1} parent=5 // pred_region
        %s94 = ssub.s32 %s11, 1
        // Predicated region
        $region25: #{tpu_custom_call.1} parent=23 // pred_check
          %p95 = pneg %p32
        $region26: #{tpu_custom_call.1} parent=23 // pred_check_branch
          %97 = sbr.rel (%p95) target = $region28
        $region27: #{tpu_custom_call.1} parent=23 // pred_region
          %98 = dma.done [#allocation3], 128
        $region28: #{tpu_custom_call.1} parent=23 // pred_fallthru
          _
        %p99 = pneg %p32
        %p100 = pneg %p29
        %p101 = pneg %p58
        %p102 = pneg %p55
        %s103 = sand.u32 %s45, 1
        %s104 = scalar_lea.sflag [#allocation4], %s103
        %s105 = sand.u32 %s45, 1
        %s106 = smul.addr %s105, 8
        %s107 = scalar_lea.vmem [#allocation5], %s106
        %v108 = vld [vmem:[#allocation2] sm:$0xff]
        %v109 = vadd.f32 %v108, 1.0
        %110 = vst [vmem:[%s107] sm:$0xff] %v109
        %s111 = sand.u32 %s45, 1
        %s112 = scalar_lea.sflag [#allocation4], %s111
        %s113 = sand.u32 %s45, 1
        %s114 = smul.addr %s113, 8
        %s115 = scalar_lea.vmem [#allocation5], %s114
        // Predicated region
        $region29: #{tpu_custom_call.1} parent=23 // pred_check
          %p116 = pneg %p55
        $region30: #{tpu_custom_call.1} parent=23 // pred_check_branch
          %118 = sbr.rel (%p116) target = $region32
        $region31: #{tpu_custom_call.1} parent=23 // pred_region
          %s120 = ssub.s32 128, 128
          %121 = vsyncadd %s112, %s120
          %s122 = smul.addr %s16, 128
          %s123 = scalar_lea.hbm %s1, %s122
          %s125 = sshll.u32 %s115, 4
          %s126 = int_to_ptr.vmem [resolvable:$true] %s125
          %128 = dma.vmem_to_hbm [thread:$0]  %s126, 128, %s123, %s112
        $region32: #{tpu_custom_call.1} parent=23 // pred_fallthru
          _
      $region24: #{tpu_custom_call.1} parent=5 // pred_fallthru
        _
      %p129 = scmp.le.s32.totalorder 2, %s11
      // Predicated region
      $region33: #{tpu_custom_call.1} parent=5 // pred_check
        %p130 = pneg %p129
      $region34: #{tpu_custom_call.1} parent=5 // pred_check_branch
        %132 = sbr.rel (%p130) target = $region36
      $region35: #{tpu_custom_call.1} parent=5 // pred_region
        %s133 = ssub.s32 %s11, 2
        // Predicated region
        $region37: #{tpu_custom_call.1} parent=35 // pred_check
          %p134 = pneg %p61
        $region38: #{tpu_custom_call.1} parent=35 // pred_check_branch
          %136 = sbr.rel (%p134) target = $region40
        $region39: #{tpu_custom_call.1} parent=35 // pred_region
          %s137 = sand.u32 %s46, 1
          %s138 = scalar_lea.sflag [#allocation4], %s137
          %s139 = sand.u32 %s46, 1
          %s140 = smul.addr %s139, 8
          %s141 = scalar_lea.vmem [#allocation5], %s140
          %142 = dma.done %s138, 128
        $region40: #{tpu_custom_call.1} parent=35 // pred_fallthru
          _
      $region36: #{tpu_custom_call.1} parent=5 // pred_fallthru
        _
    $region6: #{tpu_custom_call.1} parent=1 // loop_footer
      %s15 = sadd.s32 1, %s11
    $region7: #{tpu_custom_call.1} parent=1 // loop_footer_branch
      %10 = sbr.rel target = $region3
    $region8: #{tpu_custom_call.1} parent=1 // loop_exit
      _
    %143 = vsyncpa [#allocation3], 1
    %s144 = scalar_lea.sflag [#allocation3], 1
    %145 = vsyncpa %s144, 1
    %146 = vsyncpa [#allocation4], 1
    %s147 = scalar_lea.sflag [#allocation4], 1
    %148 = vsyncpa %s147, 1

// kernel: tpu_custom_call.1
$region0: #{tpu_custom_call.1}
  #allocation0 [shape = 'u32[]', space=smem, size = 0x4, offset = 0x4, fixed_abs, tag = 'smem constant byte address 0x4 - core index']
  #allocation1 [shape = 'u32[144,128]{1,0:T(1,128)}', space=vmem, size = 0x12000, scoped, tag = 'internal scratch']
  %s0 = inlined_call_operand.vmem [shape: bf16[8,6,64], index: 0, kind: input, shape index: {}]
  %s1 = inlined_call_operand.vmem [shape: bf16[8,6], index: 1, kind: input, shape index: {}]
  %s2 = inlined_call_operand.vmem [shape: bf16[64,32], index: 2, kind: input, shape index: {}]
  %s3 = inlined_call_operand.vmem [shape: f32[1,32], index: 3, kind: input, shape index: {}]
  %s4 = inlined_call_operand.hbm [shape: f32[8,32], index: 4, kind: output, shape index: {}]
  %s5 = sld [smem:[#allocation0]]
  $region26: #{tpu_custom_call.1} parent=0
    _
  %s7 = ssub.s32 1, %s5
  %s8 = scalar_select 0, %s7, %s5
  $region1: #{tpu_custom_call.1} parent=0
    #allocation2 [shape = 'u8[4096]{0}', space=vmem, size = 0x1000, scoped, tag = 'output window, operand 0, single buffered']
    #allocation3 [shape = 's32[1]{0}', space=sflag, size = 0x4, scoped, tag = 'scoped memory for tpu_custom_call.1']
    %9 = vsyncpa [#allocation3], 0
    // Predicated region
    $region2: #{tpu_custom_call.1} parent=1 // pred_check
      _
    $region3: #{tpu_custom_call.1} parent=1 // pred_check_branch
      %11 = sbr.rel (0) target = $region5
    $region4: #{tpu_custom_call.1} parent=1 // pred_region
      _
    $region5: #{tpu_custom_call.1} parent=1 // pred_fallthru
      _
    // Predicated region
    $region6: #{tpu_custom_call.1} parent=1 // pred_check
      _
    $region7: #{tpu_custom_call.1} parent=1 // pred_check_branch
      %13 = sbr.rel (0) target = $region9
    $region8: #{tpu_custom_call.1} parent=1 // pred_region
      _
    $region9: #{tpu_custom_call.1} parent=1 // pred_fallthru
      _
    // Predicated region
    $region10: #{tpu_custom_call.1} parent=1 // pred_check
      _
    $region11: #{tpu_custom_call.1} parent=1 // pred_check_branch
      %15 = sbr.rel (0) target = $region13
    $region12: #{tpu_custom_call.1} parent=1 // pred_region
      _
    $region13: #{tpu_custom_call.1} parent=1 // pred_fallthru
      _
    // Predicated region
    $region14: #{tpu_custom_call.1} parent=1 // pred_check
      _
    $region15: #{tpu_custom_call.1} parent=1 // pred_check_branch
      %17 = sbr.rel (0) target = $region17
    $region16: #{tpu_custom_call.1} parent=1 // pred_region
      _
    $region17: #{tpu_custom_call.1} parent=1 // pred_fallthru
      _
    %v19 = vld [vmem:[%s0] sm:$0x7]
    %v20 = vld [vmem:[%s0 + $0x4] sm:$0x7]
    %v21 = vld [vmem:[%s0 + $0x8] sm:$0x7]
    %v22 = vld [vmem:[%s0 + $0xc] sm:$0x7]
    %v23 = vld [vmem:[%s0 + $0x10] sm:$0x7]
    %v24 = vld [vmem:[%s0 + $0x14] sm:$0x7]
    %v25 = vld [vmem:[%s0 + $0x18] sm:$0x7]
    %v26 = vld [vmem:[%s0 + $0x1c] sm:$0x7]
    %v27 = vunpack.c.l.bf16 %v19
    %v28 = vunpack.c.l.bf16 %v20
    %v29 = vunpack.c.l.bf16 %v21
    %v30 = vunpack.c.l.bf16 %v22
    %v31 = vunpack.c.l.bf16 %v23
    %v32 = vunpack.c.l.bf16 %v24
    %v33 = vunpack.c.l.bf16 %v25
    %v34 = vunpack.c.l.bf16 %v26
    %v35 = vld [vmem:[%s1] sm:$0xf]
    %v36 = vunpack.c.l.bf16 %v35
    %v37 = vlaneseq
    %v38 = vshrl.u32 %v37, 7
    %v39 = vsub.s32 0, %v38
    %v40 = vrot.slane %v36, %v39
    %42 = vbcast.lane.b32.xlu0 %v40, 256
    %v43 = vpop.permute.xlu0 %42
    %v44 = vlaneseq
    %v45 = vshrl.u32 %v44, 7
    %v46 = vsub.s32 1, %v45
    %v47 = vrot.slane %v36, %v46
    %49 = vbcast.lane.b32.xlu0 %v47, 256
    %v50 = vpop.permute.xlu0 %49
    %v51 = vlaneseq
    %v52 = vshrl.u32 %v51, 7
    %v53 = vsub.s32 2, %v52
    %v54 = vrot.slane %v36, %v53
    %56 = vbcast.lane.b32.xlu0 %v54, 256
    %v57 = vpop.permute.xlu0 %56
    %v58 = vlaneseq
    %v59 = vshrl.u32 %v58, 7
    %v60 = vsub.s32 3, %v59
    %v61 = vrot.slane %v36, %v60
    %63 = vbcast.lane.b32.xlu0 %v61, 256
    %v64 = vpop.permute.xlu0 %63
    %v65 = vlaneseq
    %v66 = vshrl.u32 %v65, 7
    %v67 = vsub.s32 4, %v66
    %v68 = vrot.slane %v36, %v67
    %70 = vbcast.lane.b32.xlu0 %v68, 256
    %v71 = vpop.permute.xlu0 %70
    %v72 = vlaneseq
    %v73 = vshrl.u32 %v72, 7
    %v74 = vsub.s32 5, %v73
    %v75 = vrot.slane %v36, %v74
    %77 = vbcast.lane.b32.xlu0 %v75, 256
    %v78 = vpop.permute.xlu0 %77
    %v79 = vlaneseq
    %v80 = vshrl.u32 %v79, 7
    %v81 = vsub.s32 6, %v80
    %v82 = vrot.slane %v36, %v81
    %84 = vbcast.lane.b32.xlu0 %v82, 256
    %v85 = vpop.permute.xlu0 %84
    %v86 = vlaneseq
    %v87 = vshrl.u32 %v86, 7
    %v88 = vsub.s32 7, %v87
    %v89 = vrot.slane %v36, %v88
    %91 = vbcast.lane.b32.xlu0 %v89, 256
    %v92 = vpop.permute.xlu0 %91
    %v93 = vmul.f32 %v27, %v43
    %v94 = vmul.f32 %v28, %v50
    %v95 = vmul.f32 %v29, %v57
    %v96 = vmul.f32 %v30, %v64
    %v97 = vmul.f32 %v31, %v71
    %v98 = vmul.f32 %v32, %v78
    %v99 = vmul.f32 %v33, %v85
    %v100 = vmul.f32 %v34, %v92
    %vm101 = vcmask 521216
    %v102 = vsel %vm101, %v93, 0.0
    %v103 = vrot.slane %v102, 4
    %v104 = vadd.f32 %v102, %v103
    %v105 = vrot.slane %v104, 2
    %v106 = vadd.f32 %v104, %v105
    %v107 = vrot.slane %v106, 1
    %v108 = vadd.f32 %v106, %v107
    %v109 = vsel %vm101, %v94, 0.0
    %v110 = vrot.slane %v109, 4
    %v111 = vadd.f32 %v109, %v110
    %v112 = vrot.slane %v111, 2
    %v113 = vadd.f32 %v111, %v112
    %v114 = vrot.slane %v113, 1
    %v115 = vadd.f32 %v113, %v114
    %v116 = vsel %vm101, %v95, 0.0
    %v117 = vrot.slane %v116, 4
    %v118 = vadd.f32 %v116, %v117
    %v119 = vrot.slane %v118, 2
    %v120 = vadd.f32 %v118, %v119
    %v121 = vrot.slane %v120, 1
    %v122 = vadd.f32 %v120, %v121
    %v123 = vsel %vm101, %v96, 0.0
    %v124 = vrot.slane %v123, 4
    %v125 = vadd.f32 %v123, %v124
    %v126 = vrot.slane %v125, 2
    %v127 = vadd.f32 %v125, %v126
    %v128 = vrot.slane %v127, 1
    %v129 = vadd.f32 %v127, %v128
    %v130 = vsel %vm101, %v97, 0.0
    %v131 = vrot.slane %v130, 4
    %v132 = vadd.f32 %v130, %v131
    %v133 = vrot.slane %v132, 2
    %v134 = vadd.f32 %v132, %v133
    %v135 = vrot.slane %v134, 1
    %v136 = vadd.f32 %v134, %v135
    %v137 = vsel %vm101, %v98, 0.0
    %v138 = vrot.slane %v137, 4
    %v139 = vadd.f32 %v137, %v138
    %v140 = vrot.slane %v139, 2
    %v141 = vadd.f32 %v139, %v140
    %v142 = vrot.slane %v141, 1
    %v143 = vadd.f32 %v141, %v142
    %v144 = vsel %vm101, %v99, 0.0
    %v145 = vrot.slane %v144, 4
    %v146 = vadd.f32 %v144, %v145
    %v147 = vrot.slane %v146, 2
    %v148 = vadd.f32 %v146, %v147
    %v149 = vrot.slane %v148, 1
    %v150 = vadd.f32 %v148, %v149
    %v151 = vsel %vm101, %v100, 0.0
    %v152 = vrot.slane %v151, 4
    %v153 = vadd.f32 %v151, %v152
    %v154 = vrot.slane %v153, 2
    %v155 = vadd.f32 %v153, %v154
    %v156 = vrot.slane %v155, 1
    %v157 = vadd.f32 %v155, %v156
    %vm158 = vcmask 48128
    %v159 = vsel %vm158, %v36, 0.0
    %160 = vadd.xlane.f32.xlu0 %v159
    %v161 = vpop.xlane.xlu0 %160
    %v162 = vadd.f32 %v161, 1e-05
    %v163 = vrcp.pop %v162
    %v165 = vrot.slane %v163, 1
    %v166 = vrot.slane %v163, 2
    %v167 = vrot.slane %v163, 3
    %v168 = vrot.slane %v163, 4
    %v169 = vrot.slane %v163, 5
    %v170 = vrot.slane %v163, 6
    %v171 = vrot.slane %v163, 7
    %v180 = vmul.f32 %v108, %v163
    %v181 = vmul.f32 %v115, %v165
    %v182 = vmul.f32 %v122, %v166
    %v183 = vmul.f32 %v129, %v167
    %v184 = vmul.f32 %v136, %v168
    %v185 = vmul.f32 %v143, %v169
    %v186 = vmul.f32 %v150, %v170
    %v187 = vmul.f32 %v157, %v171
    %v188 = vpack.c.bf16 %v180, %v180
    %v189 = vpack.c.bf16 %v181, %v181
    %v190 = vpack.c.bf16 %v182, %v182
    %v191 = vpack.c.bf16 %v183, %v183
    %v192 = vpack.c.bf16 %v184, %v184
    %v193 = vpack.c.bf16 %v185, %v185
    %v194 = vpack.c.bf16 %v186, %v186
    %v195 = vpack.c.bf16 %v187, %v187
    %v196 = vld [vmem:[%s2] sm:$0xf]
    %v197 = vld [vmem:[%s2 + $0x4] sm:$0xf]
    %v198 = vld [vmem:[%s2 + $0x8] sm:$0xf]
    %v199 = vld [vmem:[%s2 + $0xc] sm:$0xf]
    %v200 = vld [vmem:[%s2 + $0x10] sm:$0xf]
    %v201 = vld [vmem:[%s2 + $0x14] sm:$0xf]
    %v202 = vld [vmem:[%s2 + $0x18] sm:$0xf]
    %v203 = vld [vmem:[%s2 + $0x1c] sm:$0xf]
    %v204 = vld [vmem:[%s3] sm:$0x1]
    %v206 = vlaneseq
    %v207 = vshrl.u32 %v206, 7
    %v208 = vsub.s32 0, %v207
    %v209 = vrot.slane %v204, %v208
    %v219 = vunpack.c.l.b16 %v188
    %v220 = vunpack.c.l.b16 %v189
    %v221 = vunpack.c.l.b16 %v190
    %v222 = vunpack.c.l.b16 %v191
    %v223 = vunpack.c.l.b16 %v192
    %v224 = vunpack.c.l.b16 %v193
    %v225 = vunpack.c.l.b16 %v194
    %v226 = vunpack.c.l.b16 %v195
    %v227 = vrot.slane %v220, 7
    %vm228 = vcmask 1041409
    %v229 = vsel %vm228, %v227, %v219
    %v230 = vrot.slane %v221, 6
    %vm231 = vcmask 1042434
    %v232 = vsel %vm231, %v230, %v229
    %v233 = vrot.slane %v222, 5
    %vm234 = vcmask 1043459
    %v235 = vsel %vm234, %v233, %v232
    %v236 = vrot.slane %v223, 4
    %vm237 = vcmask 1044484
    %v238 = vsel %vm237, %v236, %v235
    %v239 = vrot.slane %v224, 3
    %vm240 = vcmask 1045509
    %v241 = vsel %vm240, %v239, %v238
    %v242 = vrot.slane %v225, 2
    %vm243 = vcmask 1046534
    %v244 = vsel %vm243, %v242, %v241
    %v245 = vrot.slane %v226, 1
    %vm246 = vcmask 1047559
    %v247 = vsel %vm246, %v245, %v244
    %v248 = vpack.c.b16 %v247, %v247
    %v257 = vunpack.c.l.b16 %v196
    %v258 = vunpack.c.l.b16 %v197
    %v259 = vunpack.c.l.b16 %v198
    %v260 = vunpack.c.l.b16 %v199
    %v261 = vunpack.c.l.b16 %v200
    %v262 = vunpack.c.l.b16 %v201
    %v263 = vunpack.c.l.b16 %v202
    %v264 = vunpack.c.l.b16 %v203
    %v265 = vpack.c.b16 %v258, %v257
    %v266 = vpack.c.b16 %v260, %v259
    %v267 = vpack.c.b16 %v262, %v261
    %v268 = vpack.c.b16 %v264, %v263
    %vm273 = vcmask 523264
    %v275 = vsel %vm273, %v248, 0
    %277 = vmatprep.subr.bf16.mxu0 0
    %278 = vmatpush1.bf16.msra.mxu0 %v265
    %279 = vmatprep.subr.bf16.mxu0 0
    %280 = vmatpush1.bf16.msra.mxu0 %v266
    %281 = vmatprep.subr.bf16.mxu0 0
    %282 = vmatpush1.bf16.msra.mxu0 %v267
    %283 = vmatprep.subr.bf16.mxu0 0
    %284 = vmatpush1.bf16.msra.mxu0 %v268
    %285 = vmatprep.subr.bf16.mxu0 0
    %286 = vmatpush1.bf16.msra.mxu0 0
    %287 = vmatprep.subr.bf16.mxu0 0
    %288 = vmatpush1.bf16.msra.mxu0 0
    %289 = vmatprep.subr.bf16.mxu0 0
    %290 = vmatpush1.bf16.msra.mxu0 0
    %291 = vmatprep.subr.bf16.mxu0 0
    %292 = vmatpush1.bf16.msra.mxu0 0
    %293 = vmatprep.subr.bf16.mxu0 0
    %294 = vmatpush1.bf16.msra.mxu0 0
    %295 = vmatprep.subr.bf16.mxu0 0
    %296 = vmatpush1.bf16.msra.mxu0 0
    %297 = vmatprep.subr.bf16.mxu0 0
    %298 = vmatpush1.bf16.msra.mxu0 0
    %299 = vmatprep.subr.bf16.mxu0 0
    %300 = vmatpush1.bf16.msra.mxu0 0
    %301 = vmatprep.subr.bf16.mxu0 0
    %302 = vmatpush1.bf16.msra.mxu0 0
    %303 = vmatprep.subr.bf16.mxu0 0
    %304 = vmatpush1.bf16.msra.mxu0 0
    %305 = vmatprep.subr.bf16.mxu0 0
    %306 = vmatpush1.bf16.msra.mxu0 0
    %307 = vmatprep.subr.bf16.mxu0 0
    %308 = vmatpush1.bf16.msra.mxu0 0
    %309 = vmatprep.mubr.bf16.mxu0 0
    %310 = vmatmul.mubr.bf16.gmra.mrb[0].mxu0 %v275
    %v311 = vpop.f32.mrb[0].mxu0
    %v312 = vadd.f32 %v209, %v311
    %v313 = vpop.f32.mrb[0].mxu0
    %v314 = vpop.f32.mrb[0].mxu0
    %v315 = vpop.f32.mrb[0].mxu0
    %316 = vdwg.mxu0
    %v317 = vmax.f32 %v312, 0.0
    %vm318 = vcmask 261120
    %319 = vst.msk [vmem:[#allocation2] sm:$0xff] %vm318, %v317
    // Predicated region
    $region18: #{tpu_custom_call.1} parent=1 // pred_check
      _
    $region19: #{tpu_custom_call.1} parent=1 // pred_check_branch
      %321 = sbr.rel (0) target = $region21
    $region20: #{tpu_custom_call.1} parent=1 // pred_region
      %s323 = ssub.s32 128, 128
      %324 = vsyncadd [#allocation3], %s323
      %s326 = sshll.u32 [#allocation2], 4
      %s327 = int_to_ptr.vmem [resolvable:$true] %s326
      %329 = dma.vmem_to_hbm [thread:$0]  %s327, 128, %s4, [#allocation3]
    $region21: #{tpu_custom_call.1} parent=1 // pred_fallthru
      _
    // Predicated region
    $region22: #{tpu_custom_call.1} parent=1 // pred_check
      _
    $region23: #{tpu_custom_call.1} parent=1 // pred_check_branch
      %331 = sbr.rel (0) target = $region25
    $region24: #{tpu_custom_call.1} parent=1 // pred_region
      %332 = dma.done [#allocation3], 128
    $region25: #{tpu_custom_call.1} parent=1 // pred_fallthru
      _
    %333 = vsyncpa [#allocation3], 1

</llo_original>
